<compile_context>
chip_gen: v7x
topology: tpu7x:2x2x1
jax: 0.10.0
libtpu: 0.0.40
codegen_flags: <defaults>
</compile_context>

<pallas_src>
import functools

import jax
import jax.numpy as jnp
from jax.experimental import pallas as pl
from jax.experimental.pallas import tpu as pltpu

LANE = 128      # one f32 vreg lane width
TB_MAX = 256    # max batch-tile rows per MXU pass (fills v6e/v7x 256-row MXU)


def _round_up(x, m):
    return (x + m - 1) // m * m


def _lstm_kernel(x_ref, wih_ref, b_ref, wfc_ref, bfc_ref, out_ref):
    """One batch tile of the fused LSTMCell(zero-state) + Linear step.

    Gate slab layout (lane-padded, forget gate dropped since c0 == 0):
      lanes [  0,128) : input  gate i   (sigmoid)
      lanes [128,256) : output gate o   (sigmoid)
      lanes [256,384) : cell   gate g   (tanh)
    Output slab layout (single lane-dense (tb, 256) buffer):
      lanes [  0,128) : h'  (new hidden state, lane-padded with exact zeros)
      lanes [128,256) : out (fully-connected head, lane-padded with exact zeros)
    """
    x = x_ref[...]                                                     # (tb, I)
    gates = jnp.dot(x, wih_ref[...],
                    preferred_element_type=jnp.float32) + b_ref[...]  # (tb, 3*LANE)

    sig = jax.nn.sigmoid(gates[:, 0:2 * LANE])    # i and o in one EUP pass, vreg-aligned
    g_g = jnp.tanh(gates[:, 2 * LANE:3 * LANE])   # g, vreg-aligned
    i_g = sig[:, 0:LANE]
    o_g = sig[:, LANE:2 * LANE]

    # c' = i * g  (f * c0 term is exactly zero since c0 == 0)
    h_new = o_g * jnp.tanh(i_g * g_g)             # padded lanes stay exactly 0
    fc = jnp.dot(h_new, wfc_ref[...],
                 preferred_element_type=jnp.float32) + bfc_ref[...]   # (tb, LANE)

    out_ref[:, 0:LANE] = h_new                    # unmasked 128-lane store
    out_ref[:, LANE:2 * LANE] = fc                # unmasked 128-lane store


def prepare_params(w_ih, b_ih, b_hh, w_fc, b_fc, hidden_size):
    """One-time parameter prep (hoisted out of the forward path).

    w_ih: (4H, I) PyTorch gate order [i, f, g, o]; b_ih, b_hh: (4H,);
    w_fc: (O, H); b_fc: (O,). Returns lane-padded, pre-transposed f32 tensors.
    Zero padding is load-bearing: it keeps padded lanes of h'/out exactly 0.
    """
    H = hidden_size
    O = w_fc.shape[0]
    assert H <= LANE and O <= LANE

    wih_t = jnp.transpose(w_ih).astype(jnp.float32)          # (I, 4H)
    b = (b_ih + b_hh).astype(jnp.float32)                    # (4H,)

    def gate_w(g):   # pad one gate's weight columns to 128 lanes
        return jnp.pad(wih_t[:, g * H:(g + 1) * H], ((0, 0), (0, LANE - H)))

    def gate_b(g):
        return jnp.pad(b[g * H:(g + 1) * H], (0, LANE - H))

    # Keep only the live gates, reordered to [i, o, g] so one sigmoid covers a
    # contiguous 256-lane slab and one tanh covers the last 128 lanes.
    wih_p = jnp.concatenate([gate_w(0), gate_w(3), gate_w(2)], axis=1)      # (I, 3*LANE)
    b_p = jnp.concatenate([gate_b(0), gate_b(3), gate_b(2)]).reshape(1, 3 * LANE)

    wfc_p = jnp.zeros((LANE, LANE), jnp.float32).at[:H, :O].set(
        jnp.transpose(w_fc).astype(jnp.float32))                            # (128, 128)
    bfc_p = jnp.zeros((1, LANE), jnp.float32).at[0, :O].set(
        b_fc.astype(jnp.float32))                                           # (1, 128)

    return wih_p, b_p, wfc_p, bfc_p


@jax.jit
def lstm_forward_padded(x, params):
    """x: (B, I). Returns the lane-dense (Bp, 256) slab: [:, :128]=h', [:, 128:]=fc out.

    Batch is tiled along a 'parallel' grid axis so large B (e.g. T independent timesteps
    stacked as T*B rows — this forward ignores `hidden`, so steps are independent) amortizes
    launch/DMA overhead, fills the MXU M dim, and shards across both TensorCores on v7x.
    Weights use constant index_maps so they are DMA'd to VMEM once and stay resident.
    """
    wih_p, b_p, wfc_p, bfc_p = params
    x = x.astype(jnp.float32)
    B, I = x.shape

    Bp = _round_up(B, 8)                       # sublane-align batch
    tb = Bp if Bp <= TB_MAX else TB_MAX        # batch tile per grid step
    Bp = _round_up(Bp, tb)
    if Bp != B:
        x = jnp.pad(x, ((0, Bp - B), (0, 0)))  # padded rows produce finite junk; sliced off later

    grid = (Bp // tb,)
    return pl.pallas_call(
        _lstm_kernel,
        grid=grid,
        in_specs=[
            pl.BlockSpec((tb, I), lambda b: (b, 0)),          # x: pipelined per batch tile
            pl.BlockSpec((I, 3 * LANE), lambda b: (0, 0)),    # W_ih slab: resident in VMEM
            pl.BlockSpec((1, 3 * LANE), lambda b: (0, 0)),    # fused bias slab: resident
            pl.BlockSpec((LANE, LANE), lambda b: (0, 0)),     # W_fc slab: resident
            pl.BlockSpec((1, LANE), lambda b: (0, 0)),        # b_fc slab: resident
        ],
        out_specs=pl.BlockSpec((tb, 2 * LANE), lambda b: (b, 0)),
        out_shape=jax.ShapeDtypeStruct((Bp, 2 * LANE), jnp.float32),
        compiler_params=pltpu.CompilerParams(
            dimension_semantics=("parallel",),                # v7x: shard tiles over both TCs
        ),
    )(x, wih_p, b_p, wfc_p, bfc_p)


def lstm_forward(x, params, hidden_size, output_size):
    """Module-faithful API: returns (out (B, O), h' (B, H)).

    Prefer consuming lstm_forward_padded()'s lane-dense slab downstream (padded consumer
    weights) to avoid the post-call slice copies; this thin wrapper slices only for callers
    that need the exact PyTorch shapes.
    """
    B = x.shape[0]
    slab = lstm_forward_padded(x, params)
    return slab[:B, LANE:LANE + output_size], slab[:B, :hidden_size]


def _reference(x, w_ih, b_ih, b_hh, w_fc, b_fc, H):
    gates = x @ w_ih.T + b_ih + b_hh
    i = jax.nn.sigmoid(gates[:, 0 * H:1 * H])
    g = jnp.tanh(gates[:, 2 * H:3 * H])
    o = jax.nn.sigmoid(gates[:, 3 * H:4 * H])
    c = i * g
    h = o * jnp.tanh(c)
    out = h @ w_fc.T + b_fc
    return out, h


if __name__ == "__main__":
    # Small shapes consistent with the module: input=16, hidden=32, output=8.
    I, H, O = 16, 32, 8

    key = jax.random.PRNGKey(0)
    ks = jax.random.split(key, 8)
    bound = 1.0 / jnp.sqrt(jnp.float32(H))
    w_ih = jax.random.uniform(ks[0], (4 * H, I), jnp.float32, -bound, bound)
    b_ih = jax.random.uniform(ks[1], (4 * H,), jnp.float32, -bound, bound)
    b_hh = jax.random.uniform(ks[2], (4 * H,), jnp.float32, -bound, bound)
    w_fc = jax.random.uniform(ks[3], (O, H), jnp.float32, -bound, bound)
    b_fc = jax.random.uniform(ks[4], (O,), jnp.float32, -bound, bound)

    # One-time prep (transposes / bias fusion / lane padding hoisted out of the step path).
    params = jax.tree_util.tree_map(jax.block_until_ready,
                                    prepare_params(w_ih, b_ih, b_hh, w_fc, b_fc, H))

    ok = True

    # Case 1: module-sized call (batch=8), single tile.
    x_small = jax.random.normal(ks[5], (8, I), jnp.float32)
    hidden_unused = jnp.zeros((1, H), jnp.float32)  # mirrors init_hidden(); ignored by forward
    out, h_new = lstm_forward(x_small, params, H, O)
    jax.block_until_ready((out, h_new))
    out_ref, h_ref = _reference(x_small, w_ih, b_ih, b_hh, w_fc, b_fc, H)
    ok &= out.shape == (8, O) and h_new.shape == (8, H)
    ok &= bool(jnp.allclose(out, out_ref, atol=1e-5, rtol=1e-5))
    ok &= bool(jnp.allclose(h_new, h_ref, atol=1e-5, rtol=1e-5))

    # Case 2: many independent rows (e.g. T timesteps stacked: forward ignores `hidden`),
    # exercising the batch-tiled 'parallel' grid with resident weights (2 tiles of 256).
    x_big = jax.random.normal(ks[6], (512, I), jnp.float32)
    out_b, h_b = lstm_forward(x_big, params, H, O)
    jax.block_until_ready((out_b, h_b))
    out_bref, h_bref = _reference(x_big, w_ih, b_ih, b_hh, w_fc, b_fc, H)
    ok &= out_b.shape == (512, O) and h_b.shape == (512, H)
    ok &= bool(jnp.allclose(out_b, out_bref, atol=1e-5, rtol=1e-5))
    ok &= bool(jnp.allclose(h_b, h_bref, atol=1e-5, rtol=1e-5))

    assert ok
    print("KERNEL_OK")
</pallas_src>

<mosaic_0001>
module attributes {stable_mosaic.version = 11 : i64} {
  func.func @_lstm_kernel(%arg0: i32, %arg1: memref<8x16xf32, #tpu.memory_space<vmem>>, %arg2: memref<16x384xf32, #tpu.memory_space<vmem>>, %arg3: memref<1x384xf32, #tpu.memory_space<vmem>>, %arg4: memref<128x128xf32, #tpu.memory_space<vmem>>, %arg5: memref<1x128xf32, #tpu.memory_space<vmem>>, %arg6: memref<8x256xf32, #tpu.memory_space<vmem>>) attributes {dimension_semantics = [#tpu.dimension_semantics<parallel>], iteration_bounds = array<i64: 1>, scalar_prefetch = 0 : i64, scratch_operands = 0 : i64, tpu.core_type = #tpu.core_type<tc>, window_params = [{transform_indices = @transform_0, window_bounds = array<i64: 8, 16>}, {pipeline_mode = #tpu.pipeline_mode<synchronous>, transform_indices = @transform_1, window_bounds = array<i64: 16, 384>}, {pipeline_mode = #tpu.pipeline_mode<synchronous>, transform_indices = @transform_2, window_bounds = array<i64: 1, 384>}, {pipeline_mode = #tpu.pipeline_mode<synchronous>, transform_indices = @transform_3, window_bounds = array<i64: 128, 128>}, {pipeline_mode = #tpu.pipeline_mode<synchronous>, transform_indices = @transform_4, window_bounds = array<i64: 1, 128>}, {transform_indices = @transform_5, window_bounds = array<i64: 8, 256>}]} {
    %c0 = arith.constant 0 : index
    %c0_0 = arith.constant 0 : index
    %0 = vector.load %arg1[%c0, %c0_0] : memref<8x16xf32, #tpu.memory_space<vmem>>, vector<8x16xf32>
    %c0_1 = arith.constant 0 : index
    %c0_2 = arith.constant 0 : index
    %1 = vector.load %arg2[%c0_1, %c0_2] : memref<16x384xf32, #tpu.memory_space<vmem>>, vector<16x384xf32>
    %cst = arith.constant dense<0.000000e+00> : vector<8x384xf32>
    %2 = tpu.matmul %0, %1, %cst {dimension_numbers = #tpu.dot_dimension_numbers<[1], [0], [0], [1], [0, 0, 1, 1], [], []>} : vector<8x16xf32>, vector<16x384xf32>, vector<8x384xf32> -> vector<8x384xf32>
    %c0_3 = arith.constant 0 : index
    %c0_4 = arith.constant 0 : index
    %3 = vector.load %arg3[%c0_3, %c0_4] : memref<1x384xf32, #tpu.memory_space<vmem>>, vector<1x384xf32>
    %4 = vector.broadcast %3 : vector<1x384xf32> to vector<8x384xf32>
    %5 = arith.addf %2, %4 : vector<8x384xf32>
    %6 = vector.extract_strided_slice %5 {offsets = [0, 0], sizes = [8, 256], strides = [1, 1]} : vector<8x384xf32> to vector<8x256xf32>
    %7 = arith.negf %6 : vector<8x256xf32>
    %8 = math.exp %7 : vector<8x256xf32>
    %cst_5 = arith.constant 1.000000e+00 : f32
    %9 = vector.broadcast %cst_5 : f32 to vector<8x256xf32>
    %10 = arith.addf %9, %8 : vector<8x256xf32>
    %11 = arith.divf %9, %10 : vector<8x256xf32>
    %12 = vector.extract_strided_slice %5 {offsets = [0, 256], sizes = [8, 128], strides = [1, 1]} : vector<8x384xf32> to vector<8x128xf32>
    %13 = math.tanh %12 : vector<8x128xf32>
    %14 = vector.extract_strided_slice %11 {offsets = [0, 0], sizes = [8, 128], strides = [1, 1]} : vector<8x256xf32> to vector<8x128xf32>
    %15 = vector.extract_strided_slice %11 {offsets = [0, 128], sizes = [8, 128], strides = [1, 1]} : vector<8x256xf32> to vector<8x128xf32>
    %16 = arith.mulf %14, %13 : vector<8x128xf32>
    %17 = math.tanh %16 : vector<8x128xf32>
    %18 = arith.mulf %15, %17 : vector<8x128xf32>
    %c0_6 = arith.constant 0 : index
    %c0_7 = arith.constant 0 : index
    %19 = vector.load %arg4[%c0_6, %c0_7] : memref<128x128xf32, #tpu.memory_space<vmem>>, vector<128x128xf32>
    %cst_8 = arith.constant dense<0.000000e+00> : vector<8x128xf32>
    %20 = tpu.matmul %18, %19, %cst_8 {dimension_numbers = #tpu.dot_dimension_numbers<[1], [0], [0], [1], [0, 0, 1, 1], [], []>} : vector<8x128xf32>, vector<128x128xf32>, vector<8x128xf32> -> vector<8x128xf32>
    %c0_9 = arith.constant 0 : index
    %c0_10 = arith.constant 0 : index
    %21 = vector.load %arg5[%c0_9, %c0_10] : memref<1x128xf32, #tpu.memory_space<vmem>>, vector<1x128xf32>
    %22 = vector.broadcast %21 : vector<1x128xf32> to vector<8x128xf32>
    %23 = arith.addf %20, %22 : vector<8x128xf32>
    %c0_11 = arith.constant 0 : index
    %c0_12 = arith.constant 0 : index
    %24 = vector.load %arg6[%c0_11, %c0_12] : memref<8x256xf32, #tpu.memory_space<vmem>>, vector<8x128xf32>
    tpu.vector_store %arg6[%c0_11, %c0_12], %18 {strides = array<i32>} : memref<8x256xf32, #tpu.memory_space<vmem>>, vector<8x128xf32>,
    %c0_13 = arith.constant 0 : index
    %c128 = arith.constant 128 : index
    %25 = vector.load %arg6[%c0_13, %c128] : memref<8x256xf32, #tpu.memory_space<vmem>>, vector<8x128xf32>
    tpu.vector_store %arg6[%c0_13, %c128], %23 {strides = array<i32>} : memref<8x256xf32, #tpu.memory_space<vmem>>, vector<8x128xf32>,
    return
  }
  func.func @transform_0(%arg0: i32) -> (i32, i32) {
    %c0_i32 = arith.constant 0 : i32
    %c0_i32_0 = arith.constant 0 : i32
    return %arg0, %c0_i32 : i32, i32
  }
  func.func @transform_1(%arg0: i32) -> (i32, i32) {
    %c0_i32 = arith.constant 0 : i32
    %c0_i32_0 = arith.constant 0 : i32
    %c0_i32_1 = arith.constant 0 : i32
    return %c0_i32, %c0_i32_0 : i32, i32
  }
  func.func @transform_2(%arg0: i32) -> (i32, i32) {
    %c0_i32 = arith.constant 0 : i32
    %c0_i32_0 = arith.constant 0 : i32
    %c0_i32_1 = arith.constant 0 : i32
    return %c0_i32, %c0_i32_0 : i32, i32
  }
  func.func @transform_3(%arg0: i32) -> (i32, i32) {
    %c0_i32 = arith.constant 0 : i32
    %c0_i32_0 = arith.constant 0 : i32
    %c0_i32_1 = arith.constant 0 : i32
    return %c0_i32, %c0_i32_0 : i32, i32
  }
  func.func @transform_4(%arg0: i32) -> (i32, i32) {
    %c0_i32 = arith.constant 0 : i32
    %c0_i32_0 = arith.constant 0 : i32
    %c0_i32_1 = arith.constant 0 : i32
    return %c0_i32, %c0_i32_0 : i32, i32
  }
  func.func @transform_5(%arg0: i32) -> (i32, i32) {
    %c0_i32 = arith.constant 0 : i32
    %c0_i32_0 = arith.constant 0 : i32
    return %arg0, %c0_i32 : i32, i32
  }
}

</mosaic_0001>

<llo_original>
// kernel: lstm_forward_padded.1
$region0: #{lstm_forward_padded.1}
  #allocation0 [shape = 'u32[]', space=smem, size = 0x4, offset = 0x4, fixed_abs, tag = 'smem constant byte address 0x4 - core index']
  #allocation1 [shape = 'u32[144,128]{1,0:T(1,128)}', space=vmem, size = 0x12000, scoped, tag = 'internal scratch']
  %s0 = inlined_call_operand.hbm [shape: f32[8,16], index: 0, kind: input, shape index: {}]
  %s1 = inlined_call_operand.hbm [shape: f32[16,384], index: 1, kind: input, shape index: {}]
  %s2 = inlined_call_operand.vmem [shape: f32[1,384], index: 2, kind: input, shape index: {}]
  %s3 = inlined_call_operand.hbm [shape: f32[128,128], index: 3, kind: input, shape index: {}]
  %s4 = inlined_call_operand.vmem [shape: f32[1,128], index: 4, kind: input, shape index: {}]
  %s5 = inlined_call_operand.hbm [shape: f32[8,256], index: 5, kind: output, shape index: {}]
  %s6 = sld [smem:[#allocation0]]
  $region42: #{lstm_forward_padded.1} parent=0
    _
  %s8 = ssub.s32 1, %s6
  %s9 = scalar_select 0, %s8, %s6
  $region1: #{lstm_forward_padded.1} parent=0
    #allocation2 [shape = 'u8[4096]{0}', space=vmem, size = 0x1000, scoped, tag = 'input window, operand 0, single buffered']
    #allocation3 [shape = 's32[1]{0}', space=sflag, size = 0x4, scoped, tag = 'scoped memory for lstm_forward_padded.1']
    #allocation4 [shape = 's32[1]{0}', space=sflag, size = 0x4, scoped, tag = 'scoped memory for lstm_forward_padded.1']
    #allocation5 [shape = 'u8[24576]{0}', space=vmem, size = 0x6000, scoped, tag = 'input window, operand 1, single buffered']
    #allocation6 [shape = 's32[1]{0}', space=sflag, size = 0x4, scoped, tag = 'scoped memory for lstm_forward_padded.1']
    #allocation7 [shape = 'u8[65536]{0}', space=vmem, size = 0x10000, scoped, tag = 'input window, operand 3, single buffered']
    #allocation8 [shape = 'u8[8192]{0}', space=vmem, size = 0x2000, scoped, tag = 'output window, operand 0, single buffered']
    %10 = vsyncpa [#allocation3], 0
    %11 = vsyncpa [#allocation6], 0
    %12 = vsyncpa [#allocation4], 0
    // Predicated region
    $region2: #{lstm_forward_padded.1} parent=1 // pred_check
      _
    $region3: #{lstm_forward_padded.1} parent=1 // pred_check_branch
      %14 = sbr.rel (0) target = $region5
    $region4: #{lstm_forward_padded.1} parent=1 // pred_region
      %s16 = ssub.s32 128, 128
      %17 = vsyncadd [#allocation3], %s16
      %s19 = sshll.u32 [#allocation2], 4
      %s20 = int_to_ptr.vmem [resolvable:$true] %s19
      %22 = dma.hbm_to_vmem [thread:$0]  %s0, 128, %s20, [#allocation3]
    $region5: #{lstm_forward_padded.1} parent=1 // pred_fallthru
      _
    // Predicated region
    $region6: #{lstm_forward_padded.1} parent=1 // pred_check
      _
    $region7: #{lstm_forward_padded.1} parent=1 // pred_check_branch
      %24 = sbr.rel (0) target = $region9
    $region8: #{lstm_forward_padded.1} parent=1 // pred_region
      %s26 = ssub.s32 768, 768
      %27 = vsyncadd [#allocation6], %s26
      %s28 = sshll.u32 [#allocation5], 4
      %s29 = int_to_ptr.vmem [resolvable:$true] %s28
      %34 = dma.hbm_to_vmem [thread:$0]  %s1, 768, %s29, [#allocation6], 384, 384, 24
    $region9: #{lstm_forward_padded.1} parent=1 // pred_fallthru
      _
    // Predicated region
    $region10: #{lstm_forward_padded.1} parent=1 // pred_check
      _
    $region11: #{lstm_forward_padded.1} parent=1 // pred_check_branch
      %36 = sbr.rel (0) target = $region13
    $region12: #{lstm_forward_padded.1} parent=1 // pred_region
      _
    $region13: #{lstm_forward_padded.1} parent=1 // pred_fallthru
      _
    // Predicated region
    $region14: #{lstm_forward_padded.1} parent=1 // pred_check
      _
    $region15: #{lstm_forward_padded.1} parent=1 // pred_check_branch
      %38 = sbr.rel (0) target = $region17
    $region16: #{lstm_forward_padded.1} parent=1 // pred_region
      %s40 = ssub.s32 2048, 2048
      %41 = vsyncadd [#allocation6], %s40
      %s42 = sshll.u32 [#allocation7], 4
      %s43 = int_to_ptr.vmem [resolvable:$true] %s42
      %48 = dma.hbm_to_vmem [thread:$0]  %s3, 2048, %s43, [#allocation6], 128, 128, 8
    $region17: #{lstm_forward_padded.1} parent=1 // pred_fallthru
      _
    // Predicated region
    $region18: #{lstm_forward_padded.1} parent=1 // pred_check
      _
    $region19: #{lstm_forward_padded.1} parent=1 // pred_check_branch
      %50 = sbr.rel (0) target = $region21
    $region20: #{lstm_forward_padded.1} parent=1 // pred_region
      _
    $region21: #{lstm_forward_padded.1} parent=1 // pred_fallthru
      _
    // Predicated region
    $region22: #{lstm_forward_padded.1} parent=1 // pred_check
      _
    $region23: #{lstm_forward_padded.1} parent=1 // pred_check_branch
      %52 = sbr.rel (0) target = $region25
    $region24: #{lstm_forward_padded.1} parent=1 // pred_region
      %53 = dma.done [#allocation3], 128
    $region25: #{lstm_forward_padded.1} parent=1 // pred_fallthru
      _
    // Predicated region
    $region26: #{lstm_forward_padded.1} parent=1 // pred_check
      _
    $region27: #{lstm_forward_padded.1} parent=1 // pred_check_branch
      %55 = sbr.rel (0) target = $region29
    $region28: #{lstm_forward_padded.1} parent=1 // pred_region
      %56 = dma.done [#allocation6], 768
    $region29: #{lstm_forward_padded.1} parent=1 // pred_fallthru
      _
    // Predicated region
    $region30: #{lstm_forward_padded.1} parent=1 // pred_check
      _
    $region31: #{lstm_forward_padded.1} parent=1 // pred_check_branch
      %58 = sbr.rel (0) target = $region33
    $region32: #{lstm_forward_padded.1} parent=1 // pred_region
      %59 = dma.done [#allocation6], 2048
    $region33: #{lstm_forward_padded.1} parent=1 // pred_fallthru
      _
    %v60 = vld [vmem:[#allocation2] sm:$0xff]
    %v61 = vld [vmem:[#allocation5] sm:$0xff]
    %v62 = vld [vmem:[#allocation5 + $0x8] sm:$0xff]
    %v63 = vld [vmem:[#allocation5 + $0x10] sm:$0xff]
    %v64 = vld [vmem:[#allocation5 + $0x18] sm:$0xff]
    %v65 = vld [vmem:[#allocation5 + $0x20] sm:$0xff]
    %v66 = vld [vmem:[#allocation5 + $0x28] sm:$0xff]
    %v67 = vld [vmem:[%s2] sm:$0x7]
    %v69 = vlaneseq
    %v70 = vshrl.u32 %v69, 7
    %v71 = vsub.s32 0, %v70
    %v72 = vrot.slane %v67, %v71
    %v73 = vlaneseq
    %v74 = vshrl.u32 %v73, 7
    %v75 = vsub.s32 1, %v74
    %v76 = vrot.slane %v67, %v75
    %v77 = vlaneseq
    %v78 = vshrl.u32 %v77, 7
    %v79 = vsub.s32 2, %v78
    %v80 = vrot.slane %v67, %v79
    %vm84 = vcmask 130048
    %v86 = vsel %vm84, %v60, 0
    %88 = vmatprep.subr.mxu0 %v62
    %89 = vmatpush1.msra.mxu0 %v61
    %90 = vmatprep.subr.mxu0 %v65
    %91 = vmatpush1.msra.mxu0 %v64
    %92 = vmatprep.subr.mxu0 0.0
    %93 = vmatpush1.msra.mxu0 0.0
    %94 = vmatprep.subr.mxu0 0.0
    %95 = vmatpush1.msra.mxu0 0.0
    %96 = vmatprep.subr.mxu0 0.0
    %97 = vmatpush1.msra.mxu0 0.0
    %98 = vmatprep.subr.mxu0 0.0
    %99 = vmatpush1.msra.mxu0 0.0
    %100 = vmatprep.subr.mxu0 0.0
    %101 = vmatpush1.msra.mxu0 0.0
    %102 = vmatprep.subr.mxu0 0.0
    %103 = vmatpush1.msra.mxu0 0.0
    %104 = vmatprep.subr.mxu0 0.0
    %105 = vmatpush1.msra.mxu0 0.0
    %106 = vmatprep.subr.mxu0 0.0
    %107 = vmatpush1.msra.mxu0 0.0
    %108 = vmatprep.subr.mxu0 0.0
    %109 = vmatpush1.msra.mxu0 0.0
    %110 = vmatprep.subr.mxu0 0.0
    %111 = vmatpush1.msra.mxu0 0.0
    %112 = vmatprep.subr.mxu0 0.0
    %113 = vmatpush1.msra.mxu0 0.0
    %114 = vmatprep.subr.mxu0 0.0
    %115 = vmatpush1.msra.mxu0 0.0
    %116 = vmatprep.subr.mxu0 0.0
    %117 = vmatpush1.msra.mxu0 0.0
    %118 = vmatprep.subr.mxu0 0.0
    %119 = vmatpush1.msra.mxu0 0.0
    %120 = vmatprep.subr.mxu0 0.0
    %121 = vmatpush1.msra.mxu0 0.0
    %122 = vmatprep.subr.mxu0 0.0
    %123 = vmatpush1.msra.mxu0 0.0
    %124 = vmatprep.subr.mxu0 0.0
    %125 = vmatpush1.msra.mxu0 0.0
    %126 = vmatprep.subr.mxu0 0.0
    %127 = vmatpush1.msra.mxu0 0.0
    %128 = vmatprep.subr.mxu0 0.0
    %129 = vmatpush1.msra.mxu0 0.0
    %130 = vmatprep.subr.mxu0 0.0
    %131 = vmatpush1.msra.mxu0 0.0
    %132 = vmatprep.subr.mxu0 0.0
    %133 = vmatpush1.msra.mxu0 0.0
    %134 = vmatprep.subr.mxu0 0.0
    %135 = vmatpush1.msra.mxu0 0.0
    %136 = vmatprep.subr.mxu0 0.0
    %137 = vmatpush1.msra.mxu0 0.0
    %138 = vmatprep.subr.mxu0 0.0
    %139 = vmatpush1.msra.mxu0 0.0
    %140 = vmatprep.subr.mxu0 0.0
    %141 = vmatpush1.msra.mxu0 0.0
    %142 = vmatprep.subr.mxu0 0.0
    %143 = vmatpush1.msra.mxu0 0.0
    %144 = vmatprep.subr.mxu0 0.0
    %145 = vmatpush1.msra.mxu0 0.0
    %146 = vmatprep.subr.mxu0 0.0
    %147 = vmatpush1.msra.mxu0 0.0
    %148 = vmatprep.subr.mxu0 0.0
    %149 = vmatpush1.msra.mxu0 0.0
    %150 = vmatprep.subr.mxu0 0.0
    %151 = vmatpush1.msra.mxu0 0.0
    %152 = vmatprep.mubr.f32.mxu0 0.0
    %153 = vmatmul.mubr.f32.gmra.mrb[0].mxu0 %v86
    %v154 = vpop.f32.mrb[0].mxu0
    %v155 = vadd.f32 %v72, %v154
    %v156 = vpop.f32.mrb[0].mxu0
    %v157 = vadd.f32 %v76, %v156
    %158 = vdwg.mxu0
    %159 = vmatprep.subr.mxu0 0.0
    %160 = vmatpush1.msra.mxu0 %v63
    %161 = vmatprep.subr.mxu0 0.0
    %162 = vmatpush1.msra.mxu0 %v66
    %163 = vmatprep.subr.mxu0 0.0
    %164 = vmatpush1.msra.mxu0 0.0
    %165 = vmatprep.subr.mxu0 0.0
    %166 = vmatpush1.msra.mxu0 0.0
    %167 = vmatprep.subr.mxu0 0.0
    %168 = vmatpush1.msra.mxu0 0.0
    %169 = vmatprep.subr.mxu0 0.0
    %170 = vmatpush1.msra.mxu0 0.0
    %171 = vmatprep.subr.mxu0 0.0
    %172 = vmatpush1.msra.mxu0 0.0
    %173 = vmatprep.subr.mxu0 0.0
    %174 = vmatpush1.msra.mxu0 0.0
    %175 = vmatprep.subr.mxu0 0.0
    %176 = vmatpush1.msra.mxu0 0.0
    %177 = vmatprep.subr.mxu0 0.0
    %178 = vmatpush1.msra.mxu0 0.0
    %179 = vmatprep.subr.mxu0 0.0
    %180 = vmatpush1.msra.mxu0 0.0
    %181 = vmatprep.subr.mxu0 0.0
    %182 = vmatpush1.msra.mxu0 0.0
    %183 = vmatprep.subr.mxu0 0.0
    %184 = vmatpush1.msra.mxu0 0.0
    %185 = vmatprep.subr.mxu0 0.0
    %186 = vmatpush1.msra.mxu0 0.0
    %187 = vmatprep.subr.mxu0 0.0
    %188 = vmatpush1.msra.mxu0 0.0
    %189 = vmatprep.subr.mxu0 0.0
    %190 = vmatpush1.msra.mxu0 0.0
    %191 = vmatprep.subr.mxu0 0.0
    %192 = vmatpush1.msra.mxu0 0.0
    %193 = vmatprep.subr.mxu0 0.0
    %194 = vmatpush1.msra.mxu0 0.0
    %195 = vmatprep.subr.mxu0 0.0
    %196 = vmatpush1.msra.mxu0 0.0
    %197 = vmatprep.subr.mxu0 0.0
    %198 = vmatpush1.msra.mxu0 0.0
    %199 = vmatprep.subr.mxu0 0.0
    %200 = vmatpush1.msra.mxu0 0.0
    %201 = vmatprep.subr.mxu0 0.0
    %202 = vmatpush1.msra.mxu0 0.0
    %203 = vmatprep.subr.mxu0 0.0
    %204 = vmatpush1.msra.mxu0 0.0
    %205 = vmatprep.subr.mxu0 0.0
    %206 = vmatpush1.msra.mxu0 0.0
    %207 = vmatprep.subr.mxu0 0.0
    %208 = vmatpush1.msra.mxu0 0.0
    %209 = vmatprep.subr.mxu0 0.0
    %210 = vmatpush1.msra.mxu0 0.0
    %211 = vmatprep.subr.mxu0 0.0
    %212 = vmatpush1.msra.mxu0 0.0
    %213 = vmatprep.subr.mxu0 0.0
    %214 = vmatpush1.msra.mxu0 0.0
    %215 = vmatprep.subr.mxu0 0.0
    %216 = vmatpush1.msra.mxu0 0.0
    %217 = vmatprep.subr.mxu0 0.0
    %218 = vmatpush1.msra.mxu0 0.0
    %219 = vmatprep.subr.mxu0 0.0
    %220 = vmatpush1.msra.mxu0 0.0
    %221 = vmatprep.subr.mxu0 0.0
    %222 = vmatpush1.msra.mxu0 0.0
    %223 = vmatprep.mubr.f32.mxu0 0.0
    %224 = vmatmul.mubr.f32.gmra.mrb[0].mxu0 %v86
    %v225 = vpop.f32.mrb[0].mxu0
    %v226 = vadd.f32 %v80, %v225
    %v227 = vpop.f32.mrb[0].mxu0
    %228 = vdwg.mxu0
    %v229 = vxor.u32 %v155, 2147483648
    %v230 = vxor.u32 %v157, 2147483648
    %v231 = vmul.f32 %v229, 1.442695
    %v232 = vpow.pop %v231
    %v233 = vmul.f32 %v230, 1.442695
    %v234 = vpow.pop %v233
    %v235 = vadd.f32 %v232, 1.0
    %v236 = vadd.f32 %v234, 1.0
    %v237 = vrcp.pop %v235
    %v238 = vmul.f32 1.0, %v237
    %v239 = vrcp.pop %v236
    %v240 = vmul.f32 1.0, %v239
    %v241 = vtanh.pop %v226
    %v242 = vmul.f32 %v238, %v241
    %v243 = vtanh.pop %v242
    %v244 = vmul.f32 %v240, %v243
    %v245 = vld [vmem:[#allocation7] sm:$0xff]
    %v246 = vld [vmem:[#allocation7 + $0x8] sm:$0xff]
    %v247 = vld [vmem:[#allocation7 + $0x10] sm:$0xff]
    %v248 = vld [vmem:[#allocation7 + $0x18] sm:$0xff]
    %v249 = vld [vmem:[#allocation7 + $0x20] sm:$0xff]
    %v250 = vld [vmem:[#allocation7 + $0x28] sm:$0xff]
    %v251 = vld [vmem:[#allocation7 + $0x30] sm:$0xff]
    %v252 = vld [vmem:[#allocation7 + $0x38] sm:$0xff]
    %v253 = vld [vmem:[#allocation7 + $0x40] sm:$0xff]
    %v254 = vld [vmem:[#allocation7 + $0x48] sm:$0xff]
    %v255 = vld [vmem:[#allocation7 + $0x50] sm:$0xff]
    %v256 = vld [vmem:[#allocation7 + $0x58] sm:$0xff]
    %v257 = vld [vmem:[#allocation7 + $0x60] sm:$0xff]
    %v258 = vld [vmem:[#allocation7 + $0x68] sm:$0xff]
    %v259 = vld [vmem:[#allocation7 + $0x70] sm:$0xff]
    %v260 = vld [vmem:[#allocation7 + $0x78] sm:$0xff]
    %v261 = vld [vmem:[%s4] sm:$0x1]
    %v263 = vlaneseq
    %v264 = vshrl.u32 %v263, 7
    %v265 = vsub.s32 0, %v264
    %v266 = vrot.slane %v261, %v265
    %268 = vmatprep.subr.mxu0 0.0
    %269 = vmatpush1.msra.mxu0 %v245
    %270 = vmatprep.subr.mxu0 0.0
    %271 = vmatpush1.msra.mxu0 %v246
    %272 = vmatprep.subr.mxu0 0.0
    %273 = vmatpush1.msra.mxu0 %v247
    %274 = vmatprep.subr.mxu0 0.0
    %275 = vmatpush1.msra.mxu0 %v248
    %276 = vmatprep.subr.mxu0 0.0
    %277 = vmatpush1.msra.mxu0 %v249
    %278 = vmatprep.subr.mxu0 0.0
    %279 = vmatpush1.msra.mxu0 %v250
    %280 = vmatprep.subr.mxu0 0.0
    %281 = vmatpush1.msra.mxu0 %v251
    %282 = vmatprep.subr.mxu0 0.0
    %283 = vmatpush1.msra.mxu0 %v252
    %284 = vmatprep.subr.mxu0 0.0
    %285 = vmatpush1.msra.mxu0 %v253
    %286 = vmatprep.subr.mxu0 0.0
    %287 = vmatpush1.msra.mxu0 %v254
    %288 = vmatprep.subr.mxu0 0.0
    %289 = vmatpush1.msra.mxu0 %v255
    %290 = vmatprep.subr.mxu0 0.0
    %291 = vmatpush1.msra.mxu0 %v256
    %292 = vmatprep.subr.mxu0 0.0
    %293 = vmatpush1.msra.mxu0 %v257
    %294 = vmatprep.subr.mxu0 0.0
    %295 = vmatpush1.msra.mxu0 %v258
    %296 = vmatprep.subr.mxu0 0.0
    %297 = vmatpush1.msra.mxu0 %v259
    %298 = vmatprep.subr.mxu0 0.0
    %299 = vmatpush1.msra.mxu0 %v260
    %300 = vmatprep.subr.mxu0 0.0
    %301 = vmatpush1.msra.mxu0 0.0
    %302 = vmatprep.subr.mxu0 0.0
    %303 = vmatpush1.msra.mxu0 0.0
    %304 = vmatprep.subr.mxu0 0.0
    %305 = vmatpush1.msra.mxu0 0.0
    %306 = vmatprep.subr.mxu0 0.0
    %307 = vmatpush1.msra.mxu0 0.0
    %308 = vmatprep.subr.mxu0 0.0
    %309 = vmatpush1.msra.mxu0 0.0
    %310 = vmatprep.subr.mxu0 0.0
    %311 = vmatpush1.msra.mxu0 0.0
    %312 = vmatprep.subr.mxu0 0.0
    %313 = vmatpush1.msra.mxu0 0.0
    %314 = vmatprep.subr.mxu0 0.0
    %315 = vmatpush1.msra.mxu0 0.0
    %316 = vmatprep.subr.mxu0 0.0
    %317 = vmatpush1.msra.mxu0 0.0
    %318 = vmatprep.subr.mxu0 0.0
    %319 = vmatpush1.msra.mxu0 0.0
    %320 = vmatprep.subr.mxu0 0.0
    %321 = vmatpush1.msra.mxu0 0.0
    %322 = vmatprep.subr.mxu0 0.0
    %323 = vmatpush1.msra.mxu0 0.0
    %324 = vmatprep.subr.mxu0 0.0
    %325 = vmatpush1.msra.mxu0 0.0
    %326 = vmatprep.subr.mxu0 0.0
    %327 = vmatpush1.msra.mxu0 0.0
    %328 = vmatprep.subr.mxu0 0.0
    %329 = vmatpush1.msra.mxu0 0.0
    %330 = vmatprep.subr.mxu0 0.0
    %331 = vmatpush1.msra.mxu0 0.0
    %332 = vmatprep.mubr.f32.mxu0 0.0
    %333 = vmatmul.mubr.f32.gmra.mrb[0].mxu0 %v244
    %v334 = vpop.f32.mrb[0].mxu0
    %v335 = vadd.f32 %v266, %v334
    %v336 = vpop.f32.mrb[0].mxu0
    %337 = vdwg.mxu0
    %338 = vst [vmem:[#allocation8] sm:$0xff] %v244
    %339 = vst [vmem:[#allocation8 + $0x8] sm:$0xff] %v335
    // Predicated region
    $region34: #{lstm_forward_padded.1} parent=1 // pred_check
      _
    $region35: #{lstm_forward_padded.1} parent=1 // pred_check_branch
      %341 = sbr.rel (0) target = $region37
    $region36: #{lstm_forward_padded.1} parent=1 // pred_region
      %s343 = ssub.s32 256, 256
      %344 = vsyncadd [#allocation4], %s343
      %s346 = sshll.u32 [#allocation8], 4
      %s347 = int_to_ptr.vmem [resolvable:$true] %s346
      %349 = dma.vmem_to_hbm [thread:$0]  %s347, 256, %s5, [#allocation4]
    $region37: #{lstm_forward_padded.1} parent=1 // pred_fallthru
      _
    // Predicated region
    $region38: #{lstm_forward_padded.1} parent=1 // pred_check
      _
    $region39: #{lstm_forward_padded.1} parent=1 // pred_check_branch
      %351 = sbr.rel (0) target = $region41
    $region40: #{lstm_forward_padded.1} parent=1 // pred_region
      %352 = dma.done [#allocation4], 256
    $region41: #{lstm_forward_padded.1} parent=1 // pred_fallthru
      _
    %353 = vsyncpa [#allocation3], 1
    %354 = vsyncpa [#allocation6], 1
    %355 = vsyncpa [#allocation4], 1

</llo_original>
